<compile_context>
chip_gen: v6e
topology: v6e:2x2x1
jax: 0.10.0
libtpu: 0.0.40
codegen_flags: <defaults>
</compile_context>

<pallas_src>
import jax
import jax.numpy as jnp
from jax import lax
from jax.experimental import pallas as pl
from jax.experimental.pallas import tpu as pltpu

HIDDEN = 20            # hidden units of Linear(1, 20)
LANES = 128            # TPU lane count; batch laid out as (rows, 128)
GROUP = 5              # hidden units per bf16 partial sum before f32 flush
MAX_CHUNK_ROWS = 64    # rows per register-resident chunk inside the kernel
DEF_BLOCK_ROWS = 2048  # rows per grid block (1 MiB f32)


def _round_up(a, m):
    return -(-a // m) * m


def _default_compute_dtype():
    """bf16 elementwise math on v6e/v7x (bf16 VPU); f32 on v5e and older."""
    try:
        kind = jax.devices()[0].device_kind.lower()
    except Exception:
        return jnp.float32
    if any(t in kind for t in ("v2", "v3", "v4", "v5")):
        return jnp.float32
    return jnp.bfloat16


def _pick_chunk_rows(block_rows):
    c = min(MAX_CHUNK_ROWS, block_rows)
    while block_rows % c:
        c -= 8
    return c


def _pick_blocking(rows, cap=DEF_BLOCK_ROWS):
    """Blocking for the padding wrapper (rows may be anything >= 1)."""
    if rows <= 8:
        return 8, 1
    num_blocks = max(2, pl.cdiv(rows, cap))           # >=2 blocks: v7x megacore
    block_rows = _round_up(pl.cdiv(rows, num_blocks), 8)
    if block_rows > MAX_CHUNK_ROWS:                   # keep chunk loop even
        block_rows = _round_up(block_rows, MAX_CHUNK_ROWS)
    num_blocks = pl.cdiv(rows, block_rows)
    return block_rows, num_blocks


def _pick_dividing_block(rows, cap=DEF_BLOCK_ROWS):
    """Blocking for the zero-copy path: block_rows must divide rows exactly.
    Largest multiple-of-8 divisor of rows that is <= cap and leaves >= 2
    grid blocks (both v7x TensorCores) when possible."""
    if rows <= 8:
        return rows, 1
    best = 8
    b = 8
    limit = min(cap, rows // 2)
    while b <= limit:
        if rows % b == 0:
            best = b
        b += 8
    return best, rows // best


def _make_kernel(block_rows, chunk_rows, compute_dtype):
    n_chunks = block_rows // chunk_rows
    cdt = jnp.dtype(compute_dtype)
    use_f32 = cdt == jnp.dtype(jnp.float32)

    def kernel(b2_ref, w1_ref, b1_ref, w2_ref, x_ref, o_ref):
        # b2_ref: (1,) f32 SMEM.  w1/b1/w2: (HIDDEN, LANES) tables in `cdt`
        # VMEM, row j = scalar j replicated across all 128 lanes.
        # x_ref / o_ref: (block_rows, LANES) f32 VMEM tiles.
        b2 = b2_ref[0]

        def chunk(c, carry):
            r = c * chunk_rows
            if not isinstance(r, int):
                r = pl.multiple_of(r, chunk_rows)     # aligned dynamic slice
            x = x_ref[pl.ds(r, chunk_rows), :].astype(cdt)
            acc = jnp.full((chunk_rows, LANES), b2, jnp.float32)
            if use_f32:
                for j in range(HIDDEN):               # 20-unit VPU chain, f32
                    h = jnp.maximum(x * w1_ref[j, :] + b1_ref[j, :], 0.0)
                    acc = acc + h * w2_ref[j, :]
            else:
                # bf16 chain; flush bf16 partial sums of GROUP units into the
                # f32 accumulator to keep accumulation error bounded.
                for g in range(0, HIDDEN, GROUP):
                    part = jnp.zeros((chunk_rows, LANES), cdt)
                    for j in range(g, min(g + GROUP, HIDDEN)):
                        h = jnp.maximum(x * w1_ref[j, :] + b1_ref[j, :], 0.0)
                        part = part + h * w2_ref[j, :]
                    acc = acc + part.astype(jnp.float32)
            o_ref[pl.ds(r, chunk_rows), :] = acc      # full-lane unmasked store
            return carry

        if n_chunks == 1:
            chunk(0, 0)
        else:
            lax.fori_loop(0, n_chunks, chunk, 0,
                          unroll=True if n_chunks <= 4 else 2)

    return kernel


def _forward_2d(x2d, w1, b1, w2, b2, *, compute_dtype, block_rows, num_blocks):
    rows = x2d.shape[0]
    assert rows == block_rows * num_blocks
    chunk_rows = _pick_chunk_rows(block_rows)
    cdt = jnp.dtype(compute_dtype)

    # Tiny (20, 128) weight tables: per-unit scalar replicated across lanes so
    # the kernel's per-unit math is plain vector ops (no scalar extract/cast).
    def lane_table(v):
        return jnp.broadcast_to(v.astype(cdt)[:, None], (HIDDEN, LANES))

    tab_spec = pl.BlockSpec((HIDDEN, LANES), lambda i: (0, 0))
    return pl.pallas_call(
        _make_kernel(block_rows, chunk_rows, cdt),
        out_shape=jax.ShapeDtypeStruct((rows, LANES), jnp.float32),
        grid=(num_blocks,),
        in_specs=[
            pl.BlockSpec(memory_space=pltpu.MemorySpace.SMEM),       # b2 (1,)
            tab_spec, tab_spec, tab_spec,                            # w1/b1/w2
            pl.BlockSpec((block_rows, LANES), lambda i: (i, 0)),     # x tile
        ],
        out_specs=pl.BlockSpec((block_rows, LANES), lambda i: (i, 0)),
        compiler_params=pltpu.CompilerParams(
            dimension_semantics=("parallel",)),                      # v7x 2 TCs
    )(b2, lane_table(w1), lane_table(b1), lane_table(w2), x2d)


def net_forward_padded(x2d, w1, b1, w2, b2, *, compute_dtype=None,
                       block_rows=DEF_BLOCK_ROWS):
    """Zero-copy path: x2d is (rows, 128) f32 with rows % 8 == 0.
    Returns (rows, 128) f32 — no wrapper pad / slice HBM round-trips."""
    if compute_dtype is None:
        compute_dtype = _default_compute_dtype()
    rows, lanes = x2d.shape
    if lanes != LANES or rows % 8 != 0:
        raise ValueError("x2d must be (rows, 128) with rows a multiple of 8")
    br, nb = _pick_dividing_block(rows, cap=block_rows)
    return _forward_2d(x2d, w1, b1, w2, b2, compute_dtype=compute_dtype,
                       block_rows=br, num_blocks=nb)


def net_forward(x, w1, b1, w2, b2, *, compute_dtype=None,
                block_rows=DEF_BLOCK_ROWS):
    """Drop-in (N, 1) -> (N, 1) forward matching the PyTorch module.
    Pays one pad + one slice of wrapper HBM traffic for the lane-dense
    re-layout; callers that can keep data as (rows, 128) should prefer
    `net_forward_padded`."""
    if compute_dtype is None:
        compute_dtype = _default_compute_dtype()
    n = x.shape[0]
    rows = max(1, pl.cdiv(n, LANES))
    br, nb = _pick_blocking(rows, cap=block_rows)
    rows_padded = br * nb
    n_padded = rows_padded * LANES
    x2d = jnp.pad(x.reshape(-1), (0, n_padded - n)).reshape(rows_padded, LANES)
    out2d = _forward_2d(x2d, w1, b1, w2, b2, compute_dtype=compute_dtype,
                        block_rows=br, num_blocks=nb)
    return out2d.reshape(-1)[:n].reshape(n, 1)


def init_params(key):
    """Deterministic init mimicking nn.Linear's uniform(-1/sqrt(fan_in), +)."""
    k1, k2, k3, k4 = jax.random.split(key, 4)
    bound1 = 1.0                                          # fan_in = 1
    w1 = jax.random.uniform(k1, (HIDDEN,), jnp.float32, -bound1, bound1)
    b1 = jax.random.uniform(k2, (HIDDEN,), jnp.float32, -bound1, bound1)
    bound2 = 1.0 / float(jnp.sqrt(jnp.float32(HIDDEN)))  # fan_in = 20
    w2 = jax.random.uniform(k3, (HIDDEN,), jnp.float32, -bound2, bound2)
    b2 = jax.random.uniform(k4, (1,), jnp.float32, -bound2, bound2)
    return w1, b1, w2, b2


if __name__ == "__main__":
    key = jax.random.PRNGKey(0)
    k_small, k_big, k_pad, k_params = jax.random.split(key, 4)
    w1, b1, w2, b2 = init_params(k_params)

    def exact_ref(x):  # pure-JAX f32 reference == the PyTorch module's math
        h = jnp.maximum(x @ w1.reshape(1, HIDDEN) + b1.reshape(1, HIDDEN), 0.0)
        return h @ w2.reshape(HIDDEN, 1) + b2.reshape(1, 1)

    # 1) Small batch, not a multiple of 128 (pad + slice path), f32 compute.
    x_small = jax.random.normal(k_small, (300, 1), jnp.float32)
    out = jax.block_until_ready(
        net_forward(x_small, w1, b1, w2, b2, compute_dtype=jnp.float32))
    assert out.shape == (300, 1)
    assert jnp.allclose(out, exact_ref(x_small), atol=1e-4, rtol=1e-5)

    # 2) Multi-block grid + in-kernel row chunking, f32 compute.
    x_big = jax.random.normal(k_big, (16500, 1), jnp.float32)
    out = jax.block_until_ready(
        net_forward(x_big, w1, b1, w2, b2, compute_dtype=jnp.float32))
    assert jnp.allclose(out, exact_ref(x_big), atol=1e-4, rtol=1e-5)

    # 3) Zero-copy lane-dense entry point (input already (rows, 128)), f32.
    x_pad = jax.random.normal(k_pad, (16, LANES), jnp.float32)
    out2d = jax.block_until_ready(
        net_forward_padded(x_pad, w1, b1, w2, b2, compute_dtype=jnp.float32))
    assert out2d.shape == (16, LANES)
    assert jnp.allclose(out2d.reshape(-1, 1), exact_ref(x_pad.reshape(-1, 1)),
                        atol=1e-4, rtol=1e-5)

    # 4) bf16 elementwise chain with grouped f32 accumulation (v6e/v7x fast
    #    path).  Loose tolerance: per-op bf16 rounding; the exact logic is
    #    already pinned down by the f32 checks above.
    for xb in (x_small, x_big):
        out_bf = jax.block_until_ready(
            net_forward(xb, w1, b1, w2, b2, compute_dtype=jnp.bfloat16))
        assert out_bf.shape == xb.shape
        assert jnp.allclose(out_bf, exact_ref(xb), atol=0.15, rtol=0.1)

    print("KERNEL_OK")
</pallas_src>

<mosaic_0001>
module attributes {stable_mosaic.version = 11 : i64} {
  func.func @kernel(%arg0: i32, %arg1: memref<1xf32, #tpu.memory_space<smem>>, %arg2: memref<20x128xf32, #tpu.memory_space<vmem>>, %arg3: memref<20x128xf32, #tpu.memory_space<vmem>>, %arg4: memref<20x128xf32, #tpu.memory_space<vmem>>, %arg5: memref<8x128xf32, #tpu.memory_space<vmem>>, %arg6: memref<8x128xf32, #tpu.memory_space<vmem>>) attributes {dimension_semantics = [#tpu.dimension_semantics<parallel>], iteration_bounds = array<i64: 1>, scalar_prefetch = 0 : i64, scratch_operands = 0 : i64, tpu.core_type = #tpu.core_type<tc>, window_params = [{transform_indices = @transform_0, window_bounds = array<i64: 1>}, {pipeline_mode = #tpu.pipeline_mode<synchronous>, transform_indices = @transform_1, window_bounds = array<i64: 20, 128>}, {pipeline_mode = #tpu.pipeline_mode<synchronous>, transform_indices = @transform_2, window_bounds = array<i64: 20, 128>}, {pipeline_mode = #tpu.pipeline_mode<synchronous>, transform_indices = @transform_3, window_bounds = array<i64: 20, 128>}, {transform_indices = @transform_4, window_bounds = array<i64: 8, 128>}, {transform_indices = @transform_5, window_bounds = array<i64: 8, 128>}]} {
    %c0 = arith.constant 0 : index
    %0 = memref.load %arg1[%c0] : memref<1xf32, #tpu.memory_space<smem>>
    %c0_0 = arith.constant 0 : index
    %c0_1 = arith.constant 0 : index
    %1 = vector.load %arg5[%c0_0, %c0_1] : memref<8x128xf32, #tpu.memory_space<vmem>>, vector<8x128xf32>
    %2 = vector.broadcast %0 : f32 to vector<8x128xf32>
    %c0_2 = arith.constant 0 : index
    %c0_3 = arith.constant 0 : index
    %3 = vector.load %arg2[%c0_2, %c0_3] : memref<20x128xf32, #tpu.memory_space<vmem>>, vector<1x128xf32>
    %4 = vector.shape_cast %3 : vector<1x128xf32> to vector<128xf32>
    %5 = vector.shape_cast %4 : vector<128xf32> to vector<1x128xf32>
    %6 = vector.broadcast %5 : vector<1x128xf32> to vector<8x128xf32>
    %7 = arith.mulf %1, %6 : vector<8x128xf32>
    %c0_4 = arith.constant 0 : index
    %c0_5 = arith.constant 0 : index
    %8 = vector.load %arg3[%c0_4, %c0_5] : memref<20x128xf32, #tpu.memory_space<vmem>>, vector<1x128xf32>
    %9 = vector.shape_cast %8 : vector<1x128xf32> to vector<128xf32>
    %10 = vector.shape_cast %9 : vector<128xf32> to vector<1x128xf32>
    %11 = vector.broadcast %10 : vector<1x128xf32> to vector<8x128xf32>
    %12 = arith.addf %7, %11 : vector<8x128xf32>
    %cst = arith.constant 0.000000e+00 : f32
    %13 = vector.broadcast %cst : f32 to vector<8x128xf32>
    %14 = arith.maximumf %12, %13 : vector<8x128xf32>
    %c0_6 = arith.constant 0 : index
    %c0_7 = arith.constant 0 : index
    %15 = vector.load %arg4[%c0_6, %c0_7] : memref<20x128xf32, #tpu.memory_space<vmem>>, vector<1x128xf32>
    %16 = vector.shape_cast %15 : vector<1x128xf32> to vector<128xf32>
    %17 = vector.shape_cast %16 : vector<128xf32> to vector<1x128xf32>
    %18 = vector.broadcast %17 : vector<1x128xf32> to vector<8x128xf32>
    %19 = arith.mulf %14, %18 : vector<8x128xf32>
    %20 = arith.addf %2, %19 : vector<8x128xf32>
    %c1 = arith.constant 1 : index
    %c0_8 = arith.constant 0 : index
    %21 = vector.load %arg2[%c1, %c0_8] : memref<20x128xf32, #tpu.memory_space<vmem>>, vector<1x128xf32>
    %22 = vector.shape_cast %21 : vector<1x128xf32> to vector<128xf32>
    %23 = vector.shape_cast %22 : vector<128xf32> to vector<1x128xf32>
    %24 = vector.broadcast %23 : vector<1x128xf32> to vector<8x128xf32>
    %25 = arith.mulf %1, %24 : vector<8x128xf32>
    %c1_9 = arith.constant 1 : index
    %c0_10 = arith.constant 0 : index
    %26 = vector.load %arg3[%c1_9, %c0_10] : memref<20x128xf32, #tpu.memory_space<vmem>>, vector<1x128xf32>
    %27 = vector.shape_cast %26 : vector<1x128xf32> to vector<128xf32>
    %28 = vector.shape_cast %27 : vector<128xf32> to vector<1x128xf32>
    %29 = vector.broadcast %28 : vector<1x128xf32> to vector<8x128xf32>
    %30 = arith.addf %25, %29 : vector<8x128xf32>
    %cst_11 = arith.constant 0.000000e+00 : f32
    %31 = vector.broadcast %cst_11 : f32 to vector<8x128xf32>
    %32 = arith.maximumf %30, %31 : vector<8x128xf32>
    %c1_12 = arith.constant 1 : index
    %c0_13 = arith.constant 0 : index
    %33 = vector.load %arg4[%c1_12, %c0_13] : memref<20x128xf32, #tpu.memory_space<vmem>>, vector<1x128xf32>
    %34 = vector.shape_cast %33 : vector<1x128xf32> to vector<128xf32>
    %35 = vector.shape_cast %34 : vector<128xf32> to vector<1x128xf32>
    %36 = vector.broadcast %35 : vector<1x128xf32> to vector<8x128xf32>
    %37 = arith.mulf %32, %36 : vector<8x128xf32>
    %38 = arith.addf %20, %37 : vector<8x128xf32>
    %c2 = arith.constant 2 : index
    %c0_14 = arith.constant 0 : index
    %39 = vector.load %arg2[%c2, %c0_14] : memref<20x128xf32, #tpu.memory_space<vmem>>, vector<1x128xf32>
    %40 = vector.shape_cast %39 : vector<1x128xf32> to vector<128xf32>
    %41 = vector.shape_cast %40 : vector<128xf32> to vector<1x128xf32>
    %42 = vector.broadcast %41 : vector<1x128xf32> to vector<8x128xf32>
    %43 = arith.mulf %1, %42 : vector<8x128xf32>
    %c2_15 = arith.constant 2 : index
    %c0_16 = arith.constant 0 : index
    %44 = vector.load %arg3[%c2_15, %c0_16] : memref<20x128xf32, #tpu.memory_space<vmem>>, vector<1x128xf32>
    %45 = vector.shape_cast %44 : vector<1x128xf32> to vector<128xf32>
    %46 = vector.shape_cast %45 : vector<128xf32> to vector<1x128xf32>
    %47 = vector.broadcast %46 : vector<1x128xf32> to vector<8x128xf32>
    %48 = arith.addf %43, %47 : vector<8x128xf32>
    %cst_17 = arith.constant 0.000000e+00 : f32
    %49 = vector.broadcast %cst_17 : f32 to vector<8x128xf32>
    %50 = arith.maximumf %48, %49 : vector<8x128xf32>
    %c2_18 = arith.constant 2 : index
    %c0_19 = arith.constant 0 : index
    %51 = vector.load %arg4[%c2_18, %c0_19] : memref<20x128xf32, #tpu.memory_space<vmem>>, vector<1x128xf32>
    %52 = vector.shape_cast %51 : vector<1x128xf32> to vector<128xf32>
    %53 = vector.shape_cast %52 : vector<128xf32> to vector<1x128xf32>
    %54 = vector.broadcast %53 : vector<1x128xf32> to vector<8x128xf32>
    %55 = arith.mulf %50, %54 : vector<8x128xf32>
    %56 = arith.addf %38, %55 : vector<8x128xf32>
    %c3 = arith.constant 3 : index
    %c0_20 = arith.constant 0 : index
    %57 = vector.load %arg2[%c3, %c0_20] : memref<20x128xf32, #tpu.memory_space<vmem>>, vector<1x128xf32>
    %58 = vector.shape_cast %57 : vector<1x128xf32> to vector<128xf32>
    %59 = vector.shape_cast %58 : vector<128xf32> to vector<1x128xf32>
    %60 = vector.broadcast %59 : vector<1x128xf32> to vector<8x128xf32>
    %61 = arith.mulf %1, %60 : vector<8x128xf32>
    %c3_21 = arith.constant 3 : index
    %c0_22 = arith.constant 0 : index
    %62 = vector.load %arg3[%c3_21, %c0_22] : memref<20x128xf32, #tpu.memory_space<vmem>>, vector<1x128xf32>
    %63 = vector.shape_cast %62 : vector<1x128xf32> to vector<128xf32>
    %64 = vector.shape_cast %63 : vector<128xf32> to vector<1x128xf32>
    %65 = vector.broadcast %64 : vector<1x128xf32> to vector<8x128xf32>
    %66 = arith.addf %61, %65 : vector<8x128xf32>
    %cst_23 = arith.constant 0.000000e+00 : f32
    %67 = vector.broadcast %cst_23 : f32 to vector<8x128xf32>
    %68 = arith.maximumf %66, %67 : vector<8x128xf32>
    %c3_24 = arith.constant 3 : index
    %c0_25 = arith.constant 0 : index
    %69 = vector.load %arg4[%c3_24, %c0_25] : memref<20x128xf32, #tpu.memory_space<vmem>>, vector<1x128xf32>
    %70 = vector.shape_cast %69 : vector<1x128xf32> to vector<128xf32>
    %71 = vector.shape_cast %70 : vector<128xf32> to vector<1x128xf32>
    %72 = vector.broadcast %71 : vector<1x128xf32> to vector<8x128xf32>
    %73 = arith.mulf %68, %72 : vector<8x128xf32>
    %74 = arith.addf %56, %73 : vector<8x128xf32>
    %c4 = arith.constant 4 : index
    %c0_26 = arith.constant 0 : index
    %75 = vector.load %arg2[%c4, %c0_26] : memref<20x128xf32, #tpu.memory_space<vmem>>, vector<1x128xf32>
    %76 = vector.shape_cast %75 : vector<1x128xf32> to vector<128xf32>
    %77 = vector.shape_cast %76 : vector<128xf32> to vector<1x128xf32>
    %78 = vector.broadcast %77 : vector<1x128xf32> to vector<8x128xf32>
    %79 = arith.mulf %1, %78 : vector<8x128xf32>
    %c4_27 = arith.constant 4 : index
    %c0_28 = arith.constant 0 : index
    %80 = vector.load %arg3[%c4_27, %c0_28] : memref<20x128xf32, #tpu.memory_space<vmem>>, vector<1x128xf32>
    %81 = vector.shape_cast %80 : vector<1x128xf32> to vector<128xf32>
    %82 = vector.shape_cast %81 : vector<128xf32> to vector<1x128xf32>
    %83 = vector.broadcast %82 : vector<1x128xf32> to vector<8x128xf32>
    %84 = arith.addf %79, %83 : vector<8x128xf32>
    %cst_29 = arith.constant 0.000000e+00 : f32
    %85 = vector.broadcast %cst_29 : f32 to vector<8x128xf32>
    %86 = arith.maximumf %84, %85 : vector<8x128xf32>
    %c4_30 = arith.constant 4 : index
    %c0_31 = arith.constant 0 : index
    %87 = vector.load %arg4[%c4_30, %c0_31] : memref<20x128xf32, #tpu.memory_space<vmem>>, vector<1x128xf32>
    %88 = vector.shape_cast %87 : vector<1x128xf32> to vector<128xf32>
    %89 = vector.shape_cast %88 : vector<128xf32> to vector<1x128xf32>
    %90 = vector.broadcast %89 : vector<1x128xf32> to vector<8x128xf32>
    %91 = arith.mulf %86, %90 : vector<8x128xf32>
    %92 = arith.addf %74, %91 : vector<8x128xf32>
    %c5 = arith.constant 5 : index
    %c0_32 = arith.constant 0 : index
    %93 = vector.load %arg2[%c5, %c0_32] : memref<20x128xf32, #tpu.memory_space<vmem>>, vector<1x128xf32>
    %94 = vector.shape_cast %93 : vector<1x128xf32> to vector<128xf32>
    %95 = vector.shape_cast %94 : vector<128xf32> to vector<1x128xf32>
    %96 = vector.broadcast %95 : vector<1x128xf32> to vector<8x128xf32>
    %97 = arith.mulf %1, %96 : vector<8x128xf32>
    %c5_33 = arith.constant 5 : index
    %c0_34 = arith.constant 0 : index
    %98 = vector.load %arg3[%c5_33, %c0_34] : memref<20x128xf32, #tpu.memory_space<vmem>>, vector<1x128xf32>
    %99 = vector.shape_cast %98 : vector<1x128xf32> to vector<128xf32>
    %100 = vector.shape_cast %99 : vector<128xf32> to vector<1x128xf32>
    %101 = vector.broadcast %100 : vector<1x128xf32> to vector<8x128xf32>
    %102 = arith.addf %97, %101 : vector<8x128xf32>
    %cst_35 = arith.constant 0.000000e+00 : f32
    %103 = vector.broadcast %cst_35 : f32 to vector<8x128xf32>
    %104 = arith.maximumf %102, %103 : vector<8x128xf32>
    %c5_36 = arith.constant 5 : index
    %c0_37 = arith.constant 0 : index
    %105 = vector.load %arg4[%c5_36, %c0_37] : memref<20x128xf32, #tpu.memory_space<vmem>>, vector<1x128xf32>
    %106 = vector.shape_cast %105 : vector<1x128xf32> to vector<128xf32>
    %107 = vector.shape_cast %106 : vector<128xf32> to vector<1x128xf32>
    %108 = vector.broadcast %107 : vector<1x128xf32> to vector<8x128xf32>
    %109 = arith.mulf %104, %108 : vector<8x128xf32>
    %110 = arith.addf %92, %109 : vector<8x128xf32>
    %c6 = arith.constant 6 : index
    %c0_38 = arith.constant 0 : index
    %111 = vector.load %arg2[%c6, %c0_38] : memref<20x128xf32, #tpu.memory_space<vmem>>, vector<1x128xf32>
    %112 = vector.shape_cast %111 : vector<1x128xf32> to vector<128xf32>
    %113 = vector.shape_cast %112 : vector<128xf32> to vector<1x128xf32>
    %114 = vector.broadcast %113 : vector<1x128xf32> to vector<8x128xf32>
    %115 = arith.mulf %1, %114 : vector<8x128xf32>
    %c6_39 = arith.constant 6 : index
    %c0_40 = arith.constant 0 : index
    %116 = vector.load %arg3[%c6_39, %c0_40] : memref<20x128xf32, #tpu.memory_space<vmem>>, vector<1x128xf32>
    %117 = vector.shape_cast %116 : vector<1x128xf32> to vector<128xf32>
    %118 = vector.shape_cast %117 : vector<128xf32> to vector<1x128xf32>
    %119 = vector.broadcast %118 : vector<1x128xf32> to vector<8x128xf32>
    %120 = arith.addf %115, %119 : vector<8x128xf32>
    %cst_41 = arith.constant 0.000000e+00 : f32
    %121 = vector.broadcast %cst_41 : f32 to vector<8x128xf32>
    %122 = arith.maximumf %120, %121 : vector<8x128xf32>
    %c6_42 = arith.constant 6 : index
    %c0_43 = arith.constant 0 : index
    %123 = vector.load %arg4[%c6_42, %c0_43] : memref<20x128xf32, #tpu.memory_space<vmem>>, vector<1x128xf32>
    %124 = vector.shape_cast %123 : vector<1x128xf32> to vector<128xf32>
    %125 = vector.shape_cast %124 : vector<128xf32> to vector<1x128xf32>
    %126 = vector.broadcast %125 : vector<1x128xf32> to vector<8x128xf32>
    %127 = arith.mulf %122, %126 : vector<8x128xf32>
    %128 = arith.addf %110, %127 : vector<8x128xf32>
    %c7 = arith.constant 7 : index
    %c0_44 = arith.constant 0 : index
    %129 = vector.load %arg2[%c7, %c0_44] : memref<20x128xf32, #tpu.memory_space<vmem>>, vector<1x128xf32>
    %130 = vector.shape_cast %129 : vector<1x128xf32> to vector<128xf32>
    %131 = vector.shape_cast %130 : vector<128xf32> to vector<1x128xf32>
    %132 = vector.broadcast %131 : vector<1x128xf32> to vector<8x128xf32>
    %133 = arith.mulf %1, %132 : vector<8x128xf32>
    %c7_45 = arith.constant 7 : index
    %c0_46 = arith.constant 0 : index
    %134 = vector.load %arg3[%c7_45, %c0_46] : memref<20x128xf32, #tpu.memory_space<vmem>>, vector<1x128xf32>
    %135 = vector.shape_cast %134 : vector<1x128xf32> to vector<128xf32>
    %136 = vector.shape_cast %135 : vector<128xf32> to vector<1x128xf32>
    %137 = vector.broadcast %136 : vector<1x128xf32> to vector<8x128xf32>
    %138 = arith.addf %133, %137 : vector<8x128xf32>
    %cst_47 = arith.constant 0.000000e+00 : f32
    %139 = vector.broadcast %cst_47 : f32 to vector<8x128xf32>
    %140 = arith.maximumf %138, %139 : vector<8x128xf32>
    %c7_48 = arith.constant 7 : index
    %c0_49 = arith.constant 0 : index
    %141 = vector.load %arg4[%c7_48, %c0_49] : memref<20x128xf32, #tpu.memory_space<vmem>>, vector<1x128xf32>
    %142 = vector.shape_cast %141 : vector<1x128xf32> to vector<128xf32>
    %143 = vector.shape_cast %142 : vector<128xf32> to vector<1x128xf32>
    %144 = vector.broadcast %143 : vector<1x128xf32> to vector<8x128xf32>
    %145 = arith.mulf %140, %144 : vector<8x128xf32>
    %146 = arith.addf %128, %145 : vector<8x128xf32>
    %c8 = arith.constant 8 : index
    %c0_50 = arith.constant 0 : index
    %147 = vector.load %arg2[%c8, %c0_50] : memref<20x128xf32, #tpu.memory_space<vmem>>, vector<1x128xf32>
    %148 = vector.shape_cast %147 : vector<1x128xf32> to vector<128xf32>
    %149 = vector.shape_cast %148 : vector<128xf32> to vector<1x128xf32>
    %150 = vector.broadcast %149 : vector<1x128xf32> to vector<8x128xf32>
    %151 = arith.mulf %1, %150 : vector<8x128xf32>
    %c8_51 = arith.constant 8 : index
    %c0_52 = arith.constant 0 : index
    %152 = vector.load %arg3[%c8_51, %c0_52] : memref<20x128xf32, #tpu.memory_space<vmem>>, vector<1x128xf32>
    %153 = vector.shape_cast %152 : vector<1x128xf32> to vector<128xf32>
    %154 = vector.shape_cast %153 : vector<128xf32> to vector<1x128xf32>
    %155 = vector.broadcast %154 : vector<1x128xf32> to vector<8x128xf32>
    %156 = arith.addf %151, %155 : vector<8x128xf32>
    %cst_53 = arith.constant 0.000000e+00 : f32
    %157 = vector.broadcast %cst_53 : f32 to vector<8x128xf32>
    %158 = arith.maximumf %156, %157 : vector<8x128xf32>
    %c8_54 = arith.constant 8 : index
    %c0_55 = arith.constant 0 : index
    %159 = vector.load %arg4[%c8_54, %c0_55] : memref<20x128xf32, #tpu.memory_space<vmem>>, vector<1x128xf32>
    %160 = vector.shape_cast %159 : vector<1x128xf32> to vector<128xf32>
    %161 = vector.shape_cast %160 : vector<128xf32> to vector<1x128xf32>
    %162 = vector.broadcast %161 : vector<1x128xf32> to vector<8x128xf32>
    %163 = arith.mulf %158, %162 : vector<8x128xf32>
    %164 = arith.addf %146, %163 : vector<8x128xf32>
    %c9 = arith.constant 9 : index
    %c0_56 = arith.constant 0 : index
    %165 = vector.load %arg2[%c9, %c0_56] : memref<20x128xf32, #tpu.memory_space<vmem>>, vector<1x128xf32>
    %166 = vector.shape_cast %165 : vector<1x128xf32> to vector<128xf32>
    %167 = vector.shape_cast %166 : vector<128xf32> to vector<1x128xf32>
    %168 = vector.broadcast %167 : vector<1x128xf32> to vector<8x128xf32>
    %169 = arith.mulf %1, %168 : vector<8x128xf32>
    %c9_57 = arith.constant 9 : index
    %c0_58 = arith.constant 0 : index
    %170 = vector.load %arg3[%c9_57, %c0_58] : memref<20x128xf32, #tpu.memory_space<vmem>>, vector<1x128xf32>
    %171 = vector.shape_cast %170 : vector<1x128xf32> to vector<128xf32>
    %172 = vector.shape_cast %171 : vector<128xf32> to vector<1x128xf32>
    %173 = vector.broadcast %172 : vector<1x128xf32> to vector<8x128xf32>
    %174 = arith.addf %169, %173 : vector<8x128xf32>
    %cst_59 = arith.constant 0.000000e+00 : f32
    %175 = vector.broadcast %cst_59 : f32 to vector<8x128xf32>
    %176 = arith.maximumf %174, %175 : vector<8x128xf32>
    %c9_60 = arith.constant 9 : index
    %c0_61 = arith.constant 0 : index
    %177 = vector.load %arg4[%c9_60, %c0_61] : memref<20x128xf32, #tpu.memory_space<vmem>>, vector<1x128xf32>
    %178 = vector.shape_cast %177 : vector<1x128xf32> to vector<128xf32>
    %179 = vector.shape_cast %178 : vector<128xf32> to vector<1x128xf32>
    %180 = vector.broadcast %179 : vector<1x128xf32> to vector<8x128xf32>
    %181 = arith.mulf %176, %180 : vector<8x128xf32>
    %182 = arith.addf %164, %181 : vector<8x128xf32>
    %c10 = arith.constant 10 : index
    %c0_62 = arith.constant 0 : index
    %183 = vector.load %arg2[%c10, %c0_62] : memref<20x128xf32, #tpu.memory_space<vmem>>, vector<1x128xf32>
    %184 = vector.shape_cast %183 : vector<1x128xf32> to vector<128xf32>
    %185 = vector.shape_cast %184 : vector<128xf32> to vector<1x128xf32>
    %186 = vector.broadcast %185 : vector<1x128xf32> to vector<8x128xf32>
    %187 = arith.mulf %1, %186 : vector<8x128xf32>
    %c10_63 = arith.constant 10 : index
    %c0_64 = arith.constant 0 : index
    %188 = vector.load %arg3[%c10_63, %c0_64] : memref<20x128xf32, #tpu.memory_space<vmem>>, vector<1x128xf32>
    %189 = vector.shape_cast %188 : vector<1x128xf32> to vector<128xf32>
    %190 = vector.shape_cast %189 : vector<128xf32> to vector<1x128xf32>
    %191 = vector.broadcast %190 : vector<1x128xf32> to vector<8x128xf32>
    %192 = arith.addf %187, %191 : vector<8x128xf32>
    %cst_65 = arith.constant 0.000000e+00 : f32
    %193 = vector.broadcast %cst_65 : f32 to vector<8x128xf32>
    %194 = arith.maximumf %192, %193 : vector<8x128xf32>
    %c10_66 = arith.constant 10 : index
    %c0_67 = arith.constant 0 : index
    %195 = vector.load %arg4[%c10_66, %c0_67] : memref<20x128xf32, #tpu.memory_space<vmem>>, vector<1x128xf32>
    %196 = vector.shape_cast %195 : vector<1x128xf32> to vector<128xf32>
    %197 = vector.shape_cast %196 : vector<128xf32> to vector<1x128xf32>
    %198 = vector.broadcast %197 : vector<1x128xf32> to vector<8x128xf32>
    %199 = arith.mulf %194, %198 : vector<8x128xf32>
    %200 = arith.addf %182, %199 : vector<8x128xf32>
    %c11 = arith.constant 11 : index
    %c0_68 = arith.constant 0 : index
    %201 = vector.load %arg2[%c11, %c0_68] : memref<20x128xf32, #tpu.memory_space<vmem>>, vector<1x128xf32>
    %202 = vector.shape_cast %201 : vector<1x128xf32> to vector<128xf32>
    %203 = vector.shape_cast %202 : vector<128xf32> to vector<1x128xf32>
    %204 = vector.broadcast %203 : vector<1x128xf32> to vector<8x128xf32>
    %205 = arith.mulf %1, %204 : vector<8x128xf32>
    %c11_69 = arith.constant 11 : index
    %c0_70 = arith.constant 0 : index
    %206 = vector.load %arg3[%c11_69, %c0_70] : memref<20x128xf32, #tpu.memory_space<vmem>>, vector<1x128xf32>
    %207 = vector.shape_cast %206 : vector<1x128xf32> to vector<128xf32>
    %208 = vector.shape_cast %207 : vector<128xf32> to vector<1x128xf32>
    %209 = vector.broadcast %208 : vector<1x128xf32> to vector<8x128xf32>
    %210 = arith.addf %205, %209 : vector<8x128xf32>
    %cst_71 = arith.constant 0.000000e+00 : f32
    %211 = vector.broadcast %cst_71 : f32 to vector<8x128xf32>
    %212 = arith.maximumf %210, %211 : vector<8x128xf32>
    %c11_72 = arith.constant 11 : index
    %c0_73 = arith.constant 0 : index
    %213 = vector.load %arg4[%c11_72, %c0_73] : memref<20x128xf32, #tpu.memory_space<vmem>>, vector<1x128xf32>
    %214 = vector.shape_cast %213 : vector<1x128xf32> to vector<128xf32>
    %215 = vector.shape_cast %214 : vector<128xf32> to vector<1x128xf32>
    %216 = vector.broadcast %215 : vector<1x128xf32> to vector<8x128xf32>
    %217 = arith.mulf %212, %216 : vector<8x128xf32>
    %218 = arith.addf %200, %217 : vector<8x128xf32>
    %c12 = arith.constant 12 : index
    %c0_74 = arith.constant 0 : index
    %219 = vector.load %arg2[%c12, %c0_74] : memref<20x128xf32, #tpu.memory_space<vmem>>, vector<1x128xf32>
    %220 = vector.shape_cast %219 : vector<1x128xf32> to vector<128xf32>
    %221 = vector.shape_cast %220 : vector<128xf32> to vector<1x128xf32>
    %222 = vector.broadcast %221 : vector<1x128xf32> to vector<8x128xf32>
    %223 = arith.mulf %1, %222 : vector<8x128xf32>
    %c12_75 = arith.constant 12 : index
    %c0_76 = arith.constant 0 : index
    %224 = vector.load %arg3[%c12_75, %c0_76] : memref<20x128xf32, #tpu.memory_space<vmem>>, vector<1x128xf32>
    %225 = vector.shape_cast %224 : vector<1x128xf32> to vector<128xf32>
    %226 = vector.shape_cast %225 : vector<128xf32> to vector<1x128xf32>
    %227 = vector.broadcast %226 : vector<1x128xf32> to vector<8x128xf32>
    %228 = arith.addf %223, %227 : vector<8x128xf32>
    %cst_77 = arith.constant 0.000000e+00 : f32
    %229 = vector.broadcast %cst_77 : f32 to vector<8x128xf32>
    %230 = arith.maximumf %228, %229 : vector<8x128xf32>
    %c12_78 = arith.constant 12 : index
    %c0_79 = arith.constant 0 : index
    %231 = vector.load %arg4[%c12_78, %c0_79] : memref<20x128xf32, #tpu.memory_space<vmem>>, vector<1x128xf32>
    %232 = vector.shape_cast %231 : vector<1x128xf32> to vector<128xf32>
    %233 = vector.shape_cast %232 : vector<128xf32> to vector<1x128xf32>
    %234 = vector.broadcast %233 : vector<1x128xf32> to vector<8x128xf32>
    %235 = arith.mulf %230, %234 : vector<8x128xf32>
    %236 = arith.addf %218, %235 : vector<8x128xf32>
    %c13 = arith.constant 13 : index
    %c0_80 = arith.constant 0 : index
    %237 = vector.load %arg2[%c13, %c0_80] : memref<20x128xf32, #tpu.memory_space<vmem>>, vector<1x128xf32>
    %238 = vector.shape_cast %237 : vector<1x128xf32> to vector<128xf32>
    %239 = vector.shape_cast %238 : vector<128xf32> to vector<1x128xf32>
    %240 = vector.broadcast %239 : vector<1x128xf32> to vector<8x128xf32>
    %241 = arith.mulf %1, %240 : vector<8x128xf32>
    %c13_81 = arith.constant 13 : index
    %c0_82 = arith.constant 0 : index
    %242 = vector.load %arg3[%c13_81, %c0_82] : memref<20x128xf32, #tpu.memory_space<vmem>>, vector<1x128xf32>
    %243 = vector.shape_cast %242 : vector<1x128xf32> to vector<128xf32>
    %244 = vector.shape_cast %243 : vector<128xf32> to vector<1x128xf32>
    %245 = vector.broadcast %244 : vector<1x128xf32> to vector<8x128xf32>
    %246 = arith.addf %241, %245 : vector<8x128xf32>
    %cst_83 = arith.constant 0.000000e+00 : f32
    %247 = vector.broadcast %cst_83 : f32 to vector<8x128xf32>
    %248 = arith.maximumf %246, %247 : vector<8x128xf32>
    %c13_84 = arith.constant 13 : index
    %c0_85 = arith.constant 0 : index
    %249 = vector.load %arg4[%c13_84, %c0_85] : memref<20x128xf32, #tpu.memory_space<vmem>>, vector<1x128xf32>
    %250 = vector.shape_cast %249 : vector<1x128xf32> to vector<128xf32>
    %251 = vector.shape_cast %250 : vector<128xf32> to vector<1x128xf32>
    %252 = vector.broadcast %251 : vector<1x128xf32> to vector<8x128xf32>
    %253 = arith.mulf %248, %252 : vector<8x128xf32>
    %254 = arith.addf %236, %253 : vector<8x128xf32>
    %c14 = arith.constant 14 : index
    %c0_86 = arith.constant 0 : index
    %255 = vector.load %arg2[%c14, %c0_86] : memref<20x128xf32, #tpu.memory_space<vmem>>, vector<1x128xf32>
    %256 = vector.shape_cast %255 : vector<1x128xf32> to vector<128xf32>
    %257 = vector.shape_cast %256 : vector<128xf32> to vector<1x128xf32>
    %258 = vector.broadcast %257 : vector<1x128xf32> to vector<8x128xf32>
    %259 = arith.mulf %1, %258 : vector<8x128xf32>
    %c14_87 = arith.constant 14 : index
    %c0_88 = arith.constant 0 : index
    %260 = vector.load %arg3[%c14_87, %c0_88] : memref<20x128xf32, #tpu.memory_space<vmem>>, vector<1x128xf32>
    %261 = vector.shape_cast %260 : vector<1x128xf32> to vector<128xf32>
    %262 = vector.shape_cast %261 : vector<128xf32> to vector<1x128xf32>
    %263 = vector.broadcast %262 : vector<1x128xf32> to vector<8x128xf32>
    %264 = arith.addf %259, %263 : vector<8x128xf32>
    %cst_89 = arith.constant 0.000000e+00 : f32
    %265 = vector.broadcast %cst_89 : f32 to vector<8x128xf32>
    %266 = arith.maximumf %264, %265 : vector<8x128xf32>
    %c14_90 = arith.constant 14 : index
    %c0_91 = arith.constant 0 : index
    %267 = vector.load %arg4[%c14_90, %c0_91] : memref<20x128xf32, #tpu.memory_space<vmem>>, vector<1x128xf32>
    %268 = vector.shape_cast %267 : vector<1x128xf32> to vector<128xf32>
    %269 = vector.shape_cast %268 : vector<128xf32> to vector<1x128xf32>
    %270 = vector.broadcast %269 : vector<1x128xf32> to vector<8x128xf32>
    %271 = arith.mulf %266, %270 : vector<8x128xf32>
    %272 = arith.addf %254, %271 : vector<8x128xf32>
    %c15 = arith.constant 15 : index
    %c0_92 = arith.constant 0 : index
    %273 = vector.load %arg2[%c15, %c0_92] : memref<20x128xf32, #tpu.memory_space<vmem>>, vector<1x128xf32>
    %274 = vector.shape_cast %273 : vector<1x128xf32> to vector<128xf32>
    %275 = vector.shape_cast %274 : vector<128xf32> to vector<1x128xf32>
    %276 = vector.broadcast %275 : vector<1x128xf32> to vector<8x128xf32>
    %277 = arith.mulf %1, %276 : vector<8x128xf32>
    %c15_93 = arith.constant 15 : index
    %c0_94 = arith.constant 0 : index
    %278 = vector.load %arg3[%c15_93, %c0_94] : memref<20x128xf32, #tpu.memory_space<vmem>>, vector<1x128xf32>
    %279 = vector.shape_cast %278 : vector<1x128xf32> to vector<128xf32>
    %280 = vector.shape_cast %279 : vector<128xf32> to vector<1x128xf32>
    %281 = vector.broadcast %280 : vector<1x128xf32> to vector<8x128xf32>
    %282 = arith.addf %277, %281 : vector<8x128xf32>
    %cst_95 = arith.constant 0.000000e+00 : f32
    %283 = vector.broadcast %cst_95 : f32 to vector<8x128xf32>
    %284 = arith.maximumf %282, %283 : vector<8x128xf32>
    %c15_96 = arith.constant 15 : index
    %c0_97 = arith.constant 0 : index
    %285 = vector.load %arg4[%c15_96, %c0_97] : memref<20x128xf32, #tpu.memory_space<vmem>>, vector<1x128xf32>
    %286 = vector.shape_cast %285 : vector<1x128xf32> to vector<128xf32>
    %287 = vector.shape_cast %286 : vector<128xf32> to vector<1x128xf32>
    %288 = vector.broadcast %287 : vector<1x128xf32> to vector<8x128xf32>
    %289 = arith.mulf %284, %288 : vector<8x128xf32>
    %290 = arith.addf %272, %289 : vector<8x128xf32>
    %c16 = arith.constant 16 : index
    %c0_98 = arith.constant 0 : index
    %291 = vector.load %arg2[%c16, %c0_98] : memref<20x128xf32, #tpu.memory_space<vmem>>, vector<1x128xf32>
    %292 = vector.shape_cast %291 : vector<1x128xf32> to vector<128xf32>
    %293 = vector.shape_cast %292 : vector<128xf32> to vector<1x128xf32>
    %294 = vector.broadcast %293 : vector<1x128xf32> to vector<8x128xf32>
    %295 = arith.mulf %1, %294 : vector<8x128xf32>
    %c16_99 = arith.constant 16 : index
    %c0_100 = arith.constant 0 : index
    %296 = vector.load %arg3[%c16_99, %c0_100] : memref<20x128xf32, #tpu.memory_space<vmem>>, vector<1x128xf32>
    %297 = vector.shape_cast %296 : vector<1x128xf32> to vector<128xf32>
    %298 = vector.shape_cast %297 : vector<128xf32> to vector<1x128xf32>
    %299 = vector.broadcast %298 : vector<1x128xf32> to vector<8x128xf32>
    %300 = arith.addf %295, %299 : vector<8x128xf32>
    %cst_101 = arith.constant 0.000000e+00 : f32
    %301 = vector.broadcast %cst_101 : f32 to vector<8x128xf32>
    %302 = arith.maximumf %300, %301 : vector<8x128xf32>
    %c16_102 = arith.constant 16 : index
    %c0_103 = arith.constant 0 : index
    %303 = vector.load %arg4[%c16_102, %c0_103] : memref<20x128xf32, #tpu.memory_space<vmem>>, vector<1x128xf32>
    %304 = vector.shape_cast %303 : vector<1x128xf32> to vector<128xf32>
    %305 = vector.shape_cast %304 : vector<128xf32> to vector<1x128xf32>
    %306 = vector.broadcast %305 : vector<1x128xf32> to vector<8x128xf32>
    %307 = arith.mulf %302, %306 : vector<8x128xf32>
    %308 = arith.addf %290, %307 : vector<8x128xf32>
    %c17 = arith.constant 17 : index
    %c0_104 = arith.constant 0 : index
    %309 = vector.load %arg2[%c17, %c0_104] : memref<20x128xf32, #tpu.memory_space<vmem>>, vector<1x128xf32>
    %310 = vector.shape_cast %309 : vector<1x128xf32> to vector<128xf32>
    %311 = vector.shape_cast %310 : vector<128xf32> to vector<1x128xf32>
    %312 = vector.broadcast %311 : vector<1x128xf32> to vector<8x128xf32>
    %313 = arith.mulf %1, %312 : vector<8x128xf32>
    %c17_105 = arith.constant 17 : index
    %c0_106 = arith.constant 0 : index
    %314 = vector.load %arg3[%c17_105, %c0_106] : memref<20x128xf32, #tpu.memory_space<vmem>>, vector<1x128xf32>
    %315 = vector.shape_cast %314 : vector<1x128xf32> to vector<128xf32>
    %316 = vector.shape_cast %315 : vector<128xf32> to vector<1x128xf32>
    %317 = vector.broadcast %316 : vector<1x128xf32> to vector<8x128xf32>
    %318 = arith.addf %313, %317 : vector<8x128xf32>
    %cst_107 = arith.constant 0.000000e+00 : f32
    %319 = vector.broadcast %cst_107 : f32 to vector<8x128xf32>
    %320 = arith.maximumf %318, %319 : vector<8x128xf32>
    %c17_108 = arith.constant 17 : index
    %c0_109 = arith.constant 0 : index
    %321 = vector.load %arg4[%c17_108, %c0_109] : memref<20x128xf32, #tpu.memory_space<vmem>>, vector<1x128xf32>
    %322 = vector.shape_cast %321 : vector<1x128xf32> to vector<128xf32>
    %323 = vector.shape_cast %322 : vector<128xf32> to vector<1x128xf32>
    %324 = vector.broadcast %323 : vector<1x128xf32> to vector<8x128xf32>
    %325 = arith.mulf %320, %324 : vector<8x128xf32>
    %326 = arith.addf %308, %325 : vector<8x128xf32>
    %c18 = arith.constant 18 : index
    %c0_110 = arith.constant 0 : index
    %327 = vector.load %arg2[%c18, %c0_110] : memref<20x128xf32, #tpu.memory_space<vmem>>, vector<1x128xf32>
    %328 = vector.shape_cast %327 : vector<1x128xf32> to vector<128xf32>
    %329 = vector.shape_cast %328 : vector<128xf32> to vector<1x128xf32>
    %330 = vector.broadcast %329 : vector<1x128xf32> to vector<8x128xf32>
    %331 = arith.mulf %1, %330 : vector<8x128xf32>
    %c18_111 = arith.constant 18 : index
    %c0_112 = arith.constant 0 : index
    %332 = vector.load %arg3[%c18_111, %c0_112] : memref<20x128xf32, #tpu.memory_space<vmem>>, vector<1x128xf32>
    %333 = vector.shape_cast %332 : vector<1x128xf32> to vector<128xf32>
    %334 = vector.shape_cast %333 : vector<128xf32> to vector<1x128xf32>
    %335 = vector.broadcast %334 : vector<1x128xf32> to vector<8x128xf32>
    %336 = arith.addf %331, %335 : vector<8x128xf32>
    %cst_113 = arith.constant 0.000000e+00 : f32
    %337 = vector.broadcast %cst_113 : f32 to vector<8x128xf32>
    %338 = arith.maximumf %336, %337 : vector<8x128xf32>
    %c18_114 = arith.constant 18 : index
    %c0_115 = arith.constant 0 : index
    %339 = vector.load %arg4[%c18_114, %c0_115] : memref<20x128xf32, #tpu.memory_space<vmem>>, vector<1x128xf32>
    %340 = vector.shape_cast %339 : vector<1x128xf32> to vector<128xf32>
    %341 = vector.shape_cast %340 : vector<128xf32> to vector<1x128xf32>
    %342 = vector.broadcast %341 : vector<1x128xf32> to vector<8x128xf32>
    %343 = arith.mulf %338, %342 : vector<8x128xf32>
    %344 = arith.addf %326, %343 : vector<8x128xf32>
    %c19 = arith.constant 19 : index
    %c0_116 = arith.constant 0 : index
    %345 = vector.load %arg2[%c19, %c0_116] : memref<20x128xf32, #tpu.memory_space<vmem>>, vector<1x128xf32>
    %346 = vector.shape_cast %345 : vector<1x128xf32> to vector<128xf32>
    %347 = vector.shape_cast %346 : vector<128xf32> to vector<1x128xf32>
    %348 = vector.broadcast %347 : vector<1x128xf32> to vector<8x128xf32>
    %349 = arith.mulf %1, %348 : vector<8x128xf32>
    %c19_117 = arith.constant 19 : index
    %c0_118 = arith.constant 0 : index
    %350 = vector.load %arg3[%c19_117, %c0_118] : memref<20x128xf32, #tpu.memory_space<vmem>>, vector<1x128xf32>
    %351 = vector.shape_cast %350 : vector<1x128xf32> to vector<128xf32>
    %352 = vector.shape_cast %351 : vector<128xf32> to vector<1x128xf32>
    %353 = vector.broadcast %352 : vector<1x128xf32> to vector<8x128xf32>
    %354 = arith.addf %349, %353 : vector<8x128xf32>
    %cst_119 = arith.constant 0.000000e+00 : f32
    %355 = vector.broadcast %cst_119 : f32 to vector<8x128xf32>
    %356 = arith.maximumf %354, %355 : vector<8x128xf32>
    %c19_120 = arith.constant 19 : index
    %c0_121 = arith.constant 0 : index
    %357 = vector.load %arg4[%c19_120, %c0_121] : memref<20x128xf32, #tpu.memory_space<vmem>>, vector<1x128xf32>
    %358 = vector.shape_cast %357 : vector<1x128xf32> to vector<128xf32>
    %359 = vector.shape_cast %358 : vector<128xf32> to vector<1x128xf32>
    %360 = vector.broadcast %359 : vector<1x128xf32> to vector<8x128xf32>
    %361 = arith.mulf %356, %360 : vector<8x128xf32>
    %362 = arith.addf %344, %361 : vector<8x128xf32>
    %c0_122 = arith.constant 0 : index
    %c0_123 = arith.constant 0 : index
    %363 = vector.load %arg6[%c0_122, %c0_123] : memref<8x128xf32, #tpu.memory_space<vmem>>, vector<8x128xf32>
    tpu.vector_store %arg6[%c0_122, %c0_123], %362 {strides = array<i32>} : memref<8x128xf32, #tpu.memory_space<vmem>>, vector<8x128xf32>,
    return
  }
  func.func @transform_0(%arg0: i32) -> i32 {
    %c0_i32 = arith.constant 0 : i32
    %c0_i32_0 = arith.constant 0 : i32
    return %c0_i32 : i32
  }
  func.func @transform_1(%arg0: i32) -> (i32, i32) {
    %c0_i32 = arith.constant 0 : i32
    %c0_i32_0 = arith.constant 0 : i32
    %c0_i32_1 = arith.constant 0 : i32
    return %c0_i32, %c0_i32_0 : i32, i32
  }
  func.func @transform_2(%arg0: i32) -> (i32, i32) {
    %c0_i32 = arith.constant 0 : i32
    %c0_i32_0 = arith.constant 0 : i32
    %c0_i32_1 = arith.constant 0 : i32
    return %c0_i32, %c0_i32_0 : i32, i32
  }
  func.func @transform_3(%arg0: i32) -> (i32, i32) {
    %c0_i32 = arith.constant 0 : i32
    %c0_i32_0 = arith.constant 0 : i32
    %c0_i32_1 = arith.constant 0 : i32
    return %c0_i32, %c0_i32_0 : i32, i32
  }
  func.func @transform_4(%arg0: i32) -> (i32, i32) {
    %c0_i32 = arith.constant 0 : i32
    %c0_i32_0 = arith.constant 0 : i32
    return %arg0, %c0_i32 : i32, i32
  }
  func.func @transform_5(%arg0: i32) -> (i32, i32) {
    %c0_i32 = arith.constant 0 : i32
    %c0_i32_0 = arith.constant 0 : i32
    return %arg0, %c0_i32 : i32, i32
  }
}

</mosaic_0001>

<llo_original>
// kernel: tpu_custom_call.1
$region0: #{tpu_custom_call.1}
  #allocation0 [shape = 'u32[]', space=smem, size = 0x4, offset = 0x4, fixed_abs, tag = 'smem constant byte address 0x4 - core index']
  #allocation1 [shape = 'u32[144,128]{1,0:T(1,128)}', space=vmem, size = 0x12000, scoped, tag = 'internal scratch']
  #allocation2 [shape = 'f32[1]{0:T(128)S(6)}', space=smem, size = 0x200, scoped, tag = 'scoped memory for tpu_custom_call.1']
  %s0 = inlined_call_operand.<no memory space> [shape: f32[1], index: 0, kind: input, shape index: {}]
  %s1 = inlined_call_operand.hbm [shape: f32[20,128], index: 1, kind: input, shape index: {}]
  %s2 = inlined_call_operand.hbm [shape: f32[20,128], index: 2, kind: input, shape index: {}]
  %s3 = inlined_call_operand.hbm [shape: f32[20,128], index: 3, kind: input, shape index: {}]
  %s4 = inlined_call_operand.hbm [shape: f32[8,128], index: 4, kind: input, shape index: {}]
  %s5 = inlined_call_operand.hbm [shape: f32[8,128], index: 5, kind: output, shape index: {}]
  %s6 = sld [smem:[#allocation0]]
  $region46: #{tpu_custom_call.1} parent=0
    _
  %s8 = ssub.s32 1, %s6
  %s9 = scalar_select 0, %s8, %s6
  %10 = sst [smem:[#allocation2]] %s0
  $region1: #{tpu_custom_call.1} parent=0
    #allocation3 [shape = 'u8[12288]{0}', space=vmem, size = 0x3000, scoped, tag = 'input window, operand 1, single buffered']
    #allocation4 [shape = 's32[1]{0}', space=sflag, size = 0x4, scoped, tag = 'scoped memory for tpu_custom_call.1']
    #allocation5 [shape = 's32[1]{0}', space=sflag, size = 0x4, scoped, tag = 'scoped memory for tpu_custom_call.1']
    #allocation6 [shape = 'u8[12288]{0}', space=vmem, size = 0x3000, scoped, tag = 'input window, operand 2, single buffered']
    #allocation7 [shape = 's32[1]{0}', space=sflag, size = 0x4, scoped, tag = 'scoped memory for tpu_custom_call.1']
    #allocation8 [shape = 'u8[12288]{0}', space=vmem, size = 0x3000, scoped, tag = 'input window, operand 3, single buffered']
    #allocation9 [shape = 'u8[4096]{0}', space=vmem, size = 0x1000, scoped, tag = 'input window, operand 4, single buffered']
    #allocation10 [shape = 's32[1]{0}', space=sflag, size = 0x4, scoped, tag = 'scoped memory for tpu_custom_call.1']
    #allocation11 [shape = 'u8[4096]{0}', space=vmem, size = 0x1000, scoped, tag = 'output window, operand 0, single buffered']
    %11 = vsyncpa [#allocation4], 0
    %12 = vsyncpa [#allocation7], 0
    %13 = vsyncpa [#allocation10], 0
    %14 = vsyncpa [#allocation5], 0
    // Predicated region
    $region2: #{tpu_custom_call.1} parent=1 // pred_check
      _
    $region3: #{tpu_custom_call.1} parent=1 // pred_check_branch
      %16 = sbr.rel (0) target = $region5
    $region4: #{tpu_custom_call.1} parent=1 // pred_region
      _
    $region5: #{tpu_custom_call.1} parent=1 // pred_fallthru
      _
    // Predicated region
    $region6: #{tpu_custom_call.1} parent=1 // pred_check
      _
    $region7: #{tpu_custom_call.1} parent=1 // pred_check_branch
      %18 = sbr.rel (0) target = $region9
    $region8: #{tpu_custom_call.1} parent=1 // pred_region
      %s20 = ssub.s32 384, 384
      %21 = vsyncadd [#allocation4], %s20
      %s22 = sshll.u32 [#allocation3], 4
      %s23 = int_to_ptr.vmem [resolvable:$true] %s22
      %28 = dma.hbm_to_vmem [thread:$0]  %s1, 384, %s23, [#allocation4], 128, 128, 8
    $region9: #{tpu_custom_call.1} parent=1 // pred_fallthru
      _
    // Predicated region
    $region10: #{tpu_custom_call.1} parent=1 // pred_check
      _
    $region11: #{tpu_custom_call.1} parent=1 // pred_check_branch
      %30 = sbr.rel (0) target = $region13
    $region12: #{tpu_custom_call.1} parent=1 // pred_region
      %s32 = ssub.s32 384, 384
      %33 = vsyncadd [#allocation7], %s32
      %s34 = sshll.u32 [#allocation6], 4
      %s35 = int_to_ptr.vmem [resolvable:$true] %s34
      %40 = dma.hbm_to_vmem [thread:$0]  %s2, 384, %s35, [#allocation7], 128, 128, 8
    $region13: #{tpu_custom_call.1} parent=1 // pred_fallthru
      _
    // Predicated region
    $region14: #{tpu_custom_call.1} parent=1 // pred_check
      _
    $region15: #{tpu_custom_call.1} parent=1 // pred_check_branch
      %42 = sbr.rel (0) target = $region17
    $region16: #{tpu_custom_call.1} parent=1 // pred_region
      %s44 = ssub.s32 384, 384
      %45 = vsyncadd [#allocation7], %s44
      %s46 = sshll.u32 [#allocation8], 4
      %s47 = int_to_ptr.vmem [resolvable:$true] %s46
      %52 = dma.hbm_to_vmem [thread:$0]  %s3, 384, %s47, [#allocation7], 128, 128, 8
    $region17: #{tpu_custom_call.1} parent=1 // pred_fallthru
      _
    // Predicated region
    $region18: #{tpu_custom_call.1} parent=1 // pred_check
      _
    $region19: #{tpu_custom_call.1} parent=1 // pred_check_branch
      %54 = sbr.rel (0) target = $region21
    $region20: #{tpu_custom_call.1} parent=1 // pred_region
      %s56 = ssub.s32 128, 128
      %57 = vsyncadd [#allocation10], %s56
      %s59 = sshll.u32 [#allocation9], 4
      %s60 = int_to_ptr.vmem [resolvable:$true] %s59
      %62 = dma.hbm_to_vmem [thread:$0]  %s4, 128, %s60, [#allocation10]
    $region21: #{tpu_custom_call.1} parent=1 // pred_fallthru
      _
    // Predicated region
    $region22: #{tpu_custom_call.1} parent=1 // pred_check
      _
    $region23: #{tpu_custom_call.1} parent=1 // pred_check_branch
      %64 = sbr.rel (0) target = $region25
    $region24: #{tpu_custom_call.1} parent=1 // pred_region
      %65 = dma.done [#allocation4], 384
    $region25: #{tpu_custom_call.1} parent=1 // pred_fallthru
      _
    // Predicated region
    $region26: #{tpu_custom_call.1} parent=1 // pred_check
      _
    $region27: #{tpu_custom_call.1} parent=1 // pred_check_branch
      %67 = sbr.rel (0) target = $region29
    $region28: #{tpu_custom_call.1} parent=1 // pred_region
      %68 = dma.done [#allocation7], 384
    $region29: #{tpu_custom_call.1} parent=1 // pred_fallthru
      _
    // Predicated region
    $region30: #{tpu_custom_call.1} parent=1 // pred_check
      _
    $region31: #{tpu_custom_call.1} parent=1 // pred_check_branch
      %70 = sbr.rel (0) target = $region33
    $region32: #{tpu_custom_call.1} parent=1 // pred_region
      %71 = dma.done [#allocation7], 384
    $region33: #{tpu_custom_call.1} parent=1 // pred_fallthru
      _
    // Predicated region
    $region34: #{tpu_custom_call.1} parent=1 // pred_check
      _
    $region35: #{tpu_custom_call.1} parent=1 // pred_check_branch
      %73 = sbr.rel (0) target = $region37
    $region36: #{tpu_custom_call.1} parent=1 // pred_region
      %74 = dma.done [#allocation10], 128
    $region37: #{tpu_custom_call.1} parent=1 // pred_fallthru
      _
    %s75 = sld [smem:[#allocation2]]
    %v76 = vld [vmem:[#allocation9] sm:$0xff]
    %v77 = vstv %s75
    %v78 = vld [vmem:[#allocation3] sm:$0x1]
    %v79 = vlaneseq
    %v80 = vshrl.u32 %v79, 7
    %v81 = vsub.s32 0, %v80
    %v82 = vrot.slane %v78, %v81
    %v83 = vmul.f32 %v76, %v82
    %v84 = vld [vmem:[#allocation6] sm:$0x1]
    %v85 = vlaneseq
    %v86 = vshrl.u32 %v85, 7
    %v87 = vsub.s32 0, %v86
    %v88 = vrot.slane %v84, %v87
    %v89 = vadd.f32 %v83, %v88
    %v90 = vmax.f32 %v89, 0.0
    %v91 = vld [vmem:[#allocation8] sm:$0x1]
    %v92 = vlaneseq
    %v93 = vshrl.u32 %v92, 7
    %v94 = vsub.s32 0, %v93
    %v95 = vrot.slane %v91, %v94
    %v96 = vmul.f32 %v90, %v95
    %v97 = vadd.f32 %v77, %v96
    %v98 = vld [vmem:[#allocation3 + $0x1] sm:$0x1]
    %v99 = vlaneseq
    %v100 = vshrl.u32 %v99, 7
    %v101 = vsub.s32 0, %v100
    %v102 = vrot.slane %v98, %v101
    %v103 = vmul.f32 %v76, %v102
    %v104 = vld [vmem:[#allocation6 + $0x1] sm:$0x1]
    %v105 = vlaneseq
    %v106 = vshrl.u32 %v105, 7
    %v107 = vsub.s32 0, %v106
    %v108 = vrot.slane %v104, %v107
    %v109 = vadd.f32 %v103, %v108
    %v110 = vmax.f32 %v109, 0.0
    %v111 = vld [vmem:[#allocation8 + $0x1] sm:$0x1]
    %v112 = vlaneseq
    %v113 = vshrl.u32 %v112, 7
    %v114 = vsub.s32 0, %v113
    %v115 = vrot.slane %v111, %v114
    %v116 = vmul.f32 %v110, %v115
    %v117 = vadd.f32 %v97, %v116
    %v118 = vld [vmem:[#allocation3 + $0x2] sm:$0x1]
    %v119 = vlaneseq
    %v120 = vshrl.u32 %v119, 7
    %v121 = vsub.s32 0, %v120
    %v122 = vrot.slane %v118, %v121
    %v123 = vmul.f32 %v76, %v122
    %v124 = vld [vmem:[#allocation6 + $0x2] sm:$0x1]
    %v125 = vlaneseq
    %v126 = vshrl.u32 %v125, 7
    %v127 = vsub.s32 0, %v126
    %v128 = vrot.slane %v124, %v127
    %v129 = vadd.f32 %v123, %v128
    %v130 = vmax.f32 %v129, 0.0
    %v131 = vld [vmem:[#allocation8 + $0x2] sm:$0x1]
    %v132 = vlaneseq
    %v133 = vshrl.u32 %v132, 7
    %v134 = vsub.s32 0, %v133
    %v135 = vrot.slane %v131, %v134
    %v136 = vmul.f32 %v130, %v135
    %v137 = vadd.f32 %v117, %v136
    %v138 = vld [vmem:[#allocation3 + $0x3] sm:$0x1]
    %v139 = vlaneseq
    %v140 = vshrl.u32 %v139, 7
    %v141 = vsub.s32 0, %v140
    %v142 = vrot.slane %v138, %v141
    %v143 = vmul.f32 %v76, %v142
    %v144 = vld [vmem:[#allocation6 + $0x3] sm:$0x1]
    %v145 = vlaneseq
    %v146 = vshrl.u32 %v145, 7
    %v147 = vsub.s32 0, %v146
    %v148 = vrot.slane %v144, %v147
    %v149 = vadd.f32 %v143, %v148
    %v150 = vmax.f32 %v149, 0.0
    %v151 = vld [vmem:[#allocation8 + $0x3] sm:$0x1]
    %v152 = vlaneseq
    %v153 = vshrl.u32 %v152, 7
    %v154 = vsub.s32 0, %v153
    %v155 = vrot.slane %v151, %v154
    %v156 = vmul.f32 %v150, %v155
    %v157 = vadd.f32 %v137, %v156
    %v158 = vld [vmem:[#allocation3 + $0x4] sm:$0x1]
    %v159 = vlaneseq
    %v160 = vshrl.u32 %v159, 7
    %v161 = vsub.s32 0, %v160
    %v162 = vrot.slane %v158, %v161
    %v163 = vmul.f32 %v76, %v162
    %v164 = vld [vmem:[#allocation6 + $0x4] sm:$0x1]
    %v165 = vlaneseq
    %v166 = vshrl.u32 %v165, 7
    %v167 = vsub.s32 0, %v166
    %v168 = vrot.slane %v164, %v167
    %v169 = vadd.f32 %v163, %v168
    %v170 = vmax.f32 %v169, 0.0
    %v171 = vld [vmem:[#allocation8 + $0x4] sm:$0x1]
    %v172 = vlaneseq
    %v173 = vshrl.u32 %v172, 7
    %v174 = vsub.s32 0, %v173
    %v175 = vrot.slane %v171, %v174
    %v176 = vmul.f32 %v170, %v175
    %v177 = vadd.f32 %v157, %v176
    %v178 = vld [vmem:[#allocation3 + $0x5] sm:$0x1]
    %v179 = vlaneseq
    %v180 = vshrl.u32 %v179, 7
    %v181 = vsub.s32 0, %v180
    %v182 = vrot.slane %v178, %v181
    %v183 = vmul.f32 %v76, %v182
    %v184 = vld [vmem:[#allocation6 + $0x5] sm:$0x1]
    %v185 = vlaneseq
    %v186 = vshrl.u32 %v185, 7
    %v187 = vsub.s32 0, %v186
    %v188 = vrot.slane %v184, %v187
    %v189 = vadd.f32 %v183, %v188
    %v190 = vmax.f32 %v189, 0.0
    %v191 = vld [vmem:[#allocation8 + $0x5] sm:$0x1]
    %v192 = vlaneseq
    %v193 = vshrl.u32 %v192, 7
    %v194 = vsub.s32 0, %v193
    %v195 = vrot.slane %v191, %v194
    %v196 = vmul.f32 %v190, %v195
    %v197 = vadd.f32 %v177, %v196
    %v198 = vld [vmem:[#allocation3 + $0x6] sm:$0x1]
    %v199 = vlaneseq
    %v200 = vshrl.u32 %v199, 7
    %v201 = vsub.s32 0, %v200
    %v202 = vrot.slane %v198, %v201
    %v203 = vmul.f32 %v76, %v202
    %v204 = vld [vmem:[#allocation6 + $0x6] sm:$0x1]
    %v205 = vlaneseq
    %v206 = vshrl.u32 %v205, 7
    %v207 = vsub.s32 0, %v206
    %v208 = vrot.slane %v204, %v207
    %v209 = vadd.f32 %v203, %v208
    %v210 = vmax.f32 %v209, 0.0
    %v211 = vld [vmem:[#allocation8 + $0x6] sm:$0x1]
    %v212 = vlaneseq
    %v213 = vshrl.u32 %v212, 7
    %v214 = vsub.s32 0, %v213
    %v215 = vrot.slane %v211, %v214
    %v216 = vmul.f32 %v210, %v215
    %v217 = vadd.f32 %v197, %v216
    %v218 = vld [vmem:[#allocation3 + $0x7] sm:$0x1]
    %v219 = vlaneseq
    %v220 = vshrl.u32 %v219, 7
    %v221 = vsub.s32 0, %v220
    %v222 = vrot.slane %v218, %v221
    %v223 = vmul.f32 %v76, %v222
    %v224 = vld [vmem:[#allocation6 + $0x7] sm:$0x1]
    %v225 = vlaneseq
    %v226 = vshrl.u32 %v225, 7
    %v227 = vsub.s32 0, %v226
    %v228 = vrot.slane %v224, %v227
    %v229 = vadd.f32 %v223, %v228
    %v230 = vmax.f32 %v229, 0.0
    %v231 = vld [vmem:[#allocation8 + $0x7] sm:$0x1]
    %v232 = vlaneseq
    %v233 = vshrl.u32 %v232, 7
    %v234 = vsub.s32 0, %v233
    %v235 = vrot.slane %v231, %v234
    %v236 = vmul.f32 %v230, %v235
    %v237 = vadd.f32 %v217, %v236
    %v238 = vld [vmem:[#allocation3 + $0x8] sm:$0x1]
    %v239 = vlaneseq
    %v240 = vshrl.u32 %v239, 7
    %v241 = vsub.s32 0, %v240
    %v242 = vrot.slane %v238, %v241
    %v243 = vmul.f32 %v76, %v242
    %v244 = vld [vmem:[#allocation6 + $0x8] sm:$0x1]
    %v245 = vlaneseq
    %v246 = vshrl.u32 %v245, 7
    %v247 = vsub.s32 0, %v246
    %v248 = vrot.slane %v244, %v247
    %v249 = vadd.f32 %v243, %v248
    %v250 = vmax.f32 %v249, 0.0
    %v251 = vld [vmem:[#allocation8 + $0x8] sm:$0x1]
    %v252 = vlaneseq
    %v253 = vshrl.u32 %v252, 7
    %v254 = vsub.s32 0, %v253
    %v255 = vrot.slane %v251, %v254
    %v256 = vmul.f32 %v250, %v255
    %v257 = vadd.f32 %v237, %v256
    %v258 = vld [vmem:[#allocation3 + $0x9] sm:$0x1]
    %v259 = vlaneseq
    %v260 = vshrl.u32 %v259, 7
    %v261 = vsub.s32 0, %v260
    %v262 = vrot.slane %v258, %v261
    %v263 = vmul.f32 %v76, %v262
    %v264 = vld [vmem:[#allocation6 + $0x9] sm:$0x1]
    %v265 = vlaneseq
    %v266 = vshrl.u32 %v265, 7
    %v267 = vsub.s32 0, %v266
    %v268 = vrot.slane %v264, %v267
    %v269 = vadd.f32 %v263, %v268
    %v270 = vmax.f32 %v269, 0.0
    %v271 = vld [vmem:[#allocation8 + $0x9] sm:$0x1]
    %v272 = vlaneseq
    %v273 = vshrl.u32 %v272, 7
    %v274 = vsub.s32 0, %v273
    %v275 = vrot.slane %v271, %v274
    %v276 = vmul.f32 %v270, %v275
    %v277 = vadd.f32 %v257, %v276
    %v278 = vld [vmem:[#allocation3 + $0xa] sm:$0x1]
    %v279 = vlaneseq
    %v280 = vshrl.u32 %v279, 7
    %v281 = vsub.s32 0, %v280
    %v282 = vrot.slane %v278, %v281
    %v283 = vmul.f32 %v76, %v282
    %v284 = vld [vmem:[#allocation6 + $0xa] sm:$0x1]
    %v285 = vlaneseq
    %v286 = vshrl.u32 %v285, 7
    %v287 = vsub.s32 0, %v286
    %v288 = vrot.slane %v284, %v287
    %v289 = vadd.f32 %v283, %v288
    %v290 = vmax.f32 %v289, 0.0
    %v291 = vld [vmem:[#allocation8 + $0xa] sm:$0x1]
    %v292 = vlaneseq
    %v293 = vshrl.u32 %v292, 7
    %v294 = vsub.s32 0, %v293
    %v295 = vrot.slane %v291, %v294
    %v296 = vmul.f32 %v290, %v295
    %v297 = vadd.f32 %v277, %v296
    %v298 = vld [vmem:[#allocation3 + $0xb] sm:$0x1]
    %v299 = vlaneseq
    %v300 = vshrl.u32 %v299, 7
    %v301 = vsub.s32 0, %v300
    %v302 = vrot.slane %v298, %v301
    %v303 = vmul.f32 %v76, %v302
    %v304 = vld [vmem:[#allocation6 + $0xb] sm:$0x1]
    %v305 = vlaneseq
    %v306 = vshrl.u32 %v305, 7
    %v307 = vsub.s32 0, %v306
    %v308 = vrot.slane %v304, %v307
    %v309 = vadd.f32 %v303, %v308
    %v310 = vmax.f32 %v309, 0.0
    %v311 = vld [vmem:[#allocation8 + $0xb] sm:$0x1]
    %v312 = vlaneseq
    %v313 = vshrl.u32 %v312, 7
    %v314 = vsub.s32 0, %v313
    %v315 = vrot.slane %v311, %v314
    %v316 = vmul.f32 %v310, %v315
    %v317 = vadd.f32 %v297, %v316
    %v318 = vld [vmem:[#allocation3 + $0xc] sm:$0x1]
    %v319 = vlaneseq
    %v320 = vshrl.u32 %v319, 7
    %v321 = vsub.s32 0, %v320
    %v322 = vrot.slane %v318, %v321
    %v323 = vmul.f32 %v76, %v322
    %v324 = vld [vmem:[#allocation6 + $0xc] sm:$0x1]
    %v325 = vlaneseq
    %v326 = vshrl.u32 %v325, 7
    %v327 = vsub.s32 0, %v326
    %v328 = vrot.slane %v324, %v327
    %v329 = vadd.f32 %v323, %v328
    %v330 = vmax.f32 %v329, 0.0
    %v331 = vld [vmem:[#allocation8 + $0xc] sm:$0x1]
    %v332 = vlaneseq
    %v333 = vshrl.u32 %v332, 7
    %v334 = vsub.s32 0, %v333
    %v335 = vrot.slane %v331, %v334
    %v336 = vmul.f32 %v330, %v335
    %v337 = vadd.f32 %v317, %v336
    %v338 = vld [vmem:[#allocation3 + $0xd] sm:$0x1]
    %v339 = vlaneseq
    %v340 = vshrl.u32 %v339, 7
    %v341 = vsub.s32 0, %v340
    %v342 = vrot.slane %v338, %v341
    %v343 = vmul.f32 %v76, %v342
    %v344 = vld [vmem:[#allocation6 + $0xd] sm:$0x1]
    %v345 = vlaneseq
    %v346 = vshrl.u32 %v345, 7
    %v347 = vsub.s32 0, %v346
    %v348 = vrot.slane %v344, %v347
    %v349 = vadd.f32 %v343, %v348
    %v350 = vmax.f32 %v349, 0.0
    %v351 = vld [vmem:[#allocation8 + $0xd] sm:$0x1]
    %v352 = vlaneseq
    %v353 = vshrl.u32 %v352, 7
    %v354 = vsub.s32 0, %v353
    %v355 = vrot.slane %v351, %v354
    %v356 = vmul.f32 %v350, %v355
    %v357 = vadd.f32 %v337, %v356
    %v358 = vld [vmem:[#allocation3 + $0xe] sm:$0x1]
    %v359 = vlaneseq
    %v360 = vshrl.u32 %v359, 7
    %v361 = vsub.s32 0, %v360
    %v362 = vrot.slane %v358, %v361
    %v363 = vmul.f32 %v76, %v362
    %v364 = vld [vmem:[#allocation6 + $0xe] sm:$0x1]
    %v365 = vlaneseq
    %v366 = vshrl.u32 %v365, 7
    %v367 = vsub.s32 0, %v366
    %v368 = vrot.slane %v364, %v367
    %v369 = vadd.f32 %v363, %v368
    %v370 = vmax.f32 %v369, 0.0
    %v371 = vld [vmem:[#allocation8 + $0xe] sm:$0x1]
    %v372 = vlaneseq
    %v373 = vshrl.u32 %v372, 7
    %v374 = vsub.s32 0, %v373
    %v375 = vrot.slane %v371, %v374
    %v376 = vmul.f32 %v370, %v375
    %v377 = vadd.f32 %v357, %v376
    %v378 = vld [vmem:[#allocation3 + $0xf] sm:$0x1]
    %v379 = vlaneseq
    %v380 = vshrl.u32 %v379, 7
    %v381 = vsub.s32 0, %v380
    %v382 = vrot.slane %v378, %v381
    %v383 = vmul.f32 %v76, %v382
    %v384 = vld [vmem:[#allocation6 + $0xf] sm:$0x1]
    %v385 = vlaneseq
    %v386 = vshrl.u32 %v385, 7
    %v387 = vsub.s32 0, %v386
    %v388 = vrot.slane %v384, %v387
    %v389 = vadd.f32 %v383, %v388
    %v390 = vmax.f32 %v389, 0.0
    %v391 = vld [vmem:[#allocation8 + $0xf] sm:$0x1]
    %v392 = vlaneseq
    %v393 = vshrl.u32 %v392, 7
    %v394 = vsub.s32 0, %v393
    %v395 = vrot.slane %v391, %v394
    %v396 = vmul.f32 %v390, %v395
    %v397 = vadd.f32 %v377, %v396
    %v398 = vld [vmem:[#allocation3 + $0x10] sm:$0x1]
    %v399 = vlaneseq
    %v400 = vshrl.u32 %v399, 7
    %v401 = vsub.s32 0, %v400
    %v402 = vrot.slane %v398, %v401
    %v403 = vmul.f32 %v76, %v402
    %v404 = vld [vmem:[#allocation6 + $0x10] sm:$0x1]
    %v405 = vlaneseq
    %v406 = vshrl.u32 %v405, 7
    %v407 = vsub.s32 0, %v406
    %v408 = vrot.slane %v404, %v407
    %v409 = vadd.f32 %v403, %v408
    %v410 = vmax.f32 %v409, 0.0
    %v411 = vld [vmem:[#allocation8 + $0x10] sm:$0x1]
    %v412 = vlaneseq
    %v413 = vshrl.u32 %v412, 7
    %v414 = vsub.s32 0, %v413
    %v415 = vrot.slane %v411, %v414
    %v416 = vmul.f32 %v410, %v415
    %v417 = vadd.f32 %v397, %v416
    %v418 = vld [vmem:[#allocation3 + $0x11] sm:$0x1]
    %v419 = vlaneseq
    %v420 = vshrl.u32 %v419, 7
    %v421 = vsub.s32 0, %v420
    %v422 = vrot.slane %v418, %v421
    %v423 = vmul.f32 %v76, %v422
    %v424 = vld [vmem:[#allocation6 + $0x11] sm:$0x1]
    %v425 = vlaneseq
    %v426 = vshrl.u32 %v425, 7
    %v427 = vsub.s32 0, %v426
    %v428 = vrot.slane %v424, %v427
    %v429 = vadd.f32 %v423, %v428
    %v430 = vmax.f32 %v429, 0.0
    %v431 = vld [vmem:[#allocation8 + $0x11] sm:$0x1]
    %v432 = vlaneseq
    %v433 = vshrl.u32 %v432, 7
    %v434 = vsub.s32 0, %v433
    %v435 = vrot.slane %v431, %v434
    %v436 = vmul.f32 %v430, %v435
    %v437 = vadd.f32 %v417, %v436
    %v438 = vld [vmem:[#allocation3 + $0x12] sm:$0x1]
    %v439 = vlaneseq
    %v440 = vshrl.u32 %v439, 7
    %v441 = vsub.s32 0, %v440
    %v442 = vrot.slane %v438, %v441
    %v443 = vmul.f32 %v76, %v442
    %v444 = vld [vmem:[#allocation6 + $0x12] sm:$0x1]
    %v445 = vlaneseq
    %v446 = vshrl.u32 %v445, 7
    %v447 = vsub.s32 0, %v446
    %v448 = vrot.slane %v444, %v447
    %v449 = vadd.f32 %v443, %v448
    %v450 = vmax.f32 %v449, 0.0
    %v451 = vld [vmem:[#allocation8 + $0x12] sm:$0x1]
    %v452 = vlaneseq
    %v453 = vshrl.u32 %v452, 7
    %v454 = vsub.s32 0, %v453
    %v455 = vrot.slane %v451, %v454
    %v456 = vmul.f32 %v450, %v455
    %v457 = vadd.f32 %v437, %v456
    %v458 = vld [vmem:[#allocation3 + $0x13] sm:$0x1]
    %v459 = vlaneseq
    %v460 = vshrl.u32 %v459, 7
    %v461 = vsub.s32 0, %v460
    %v462 = vrot.slane %v458, %v461
    %v463 = vmul.f32 %v76, %v462
    %v464 = vld [vmem:[#allocation6 + $0x13] sm:$0x1]
    %v465 = vlaneseq
    %v466 = vshrl.u32 %v465, 7
    %v467 = vsub.s32 0, %v466
    %v468 = vrot.slane %v464, %v467
    %v469 = vadd.f32 %v463, %v468
    %v470 = vmax.f32 %v469, 0.0
    %v471 = vld [vmem:[#allocation8 + $0x13] sm:$0x1]
    %v472 = vlaneseq
    %v473 = vshrl.u32 %v472, 7
    %v474 = vsub.s32 0, %v473
    %v475 = vrot.slane %v471, %v474
    %v476 = vmul.f32 %v470, %v475
    %v477 = vadd.f32 %v457, %v476
    %478 = vst [vmem:[#allocation11] sm:$0xff] %v477
    // Predicated region
    $region38: #{tpu_custom_call.1} parent=1 // pred_check
      _
    $region39: #{tpu_custom_call.1} parent=1 // pred_check_branch
      %480 = sbr.rel (0) target = $region41
    $region40: #{tpu_custom_call.1} parent=1 // pred_region
      %s482 = ssub.s32 128, 128
      %483 = vsyncadd [#allocation5], %s482
      %s485 = sshll.u32 [#allocation11], 4
      %s486 = int_to_ptr.vmem [resolvable:$true] %s485
      %488 = dma.vmem_to_hbm [thread:$0]  %s486, 128, %s5, [#allocation5]
    $region41: #{tpu_custom_call.1} parent=1 // pred_fallthru
      _
    // Predicated region
    $region42: #{tpu_custom_call.1} parent=1 // pred_check
      _
    $region43: #{tpu_custom_call.1} parent=1 // pred_check_branch
      %490 = sbr.rel (0) target = $region45
    $region44: #{tpu_custom_call.1} parent=1 // pred_region
      %491 = dma.done [#allocation5], 128
    $region45: #{tpu_custom_call.1} parent=1 // pred_fallthru
      _
    %492 = vsyncpa [#allocation4], 1
    %493 = vsyncpa [#allocation7], 1
    %494 = vsyncpa [#allocation10], 1
    %495 = vsyncpa [#allocation5], 1

</llo_original>
